<compile_context>
chip_gen: v7x
topology: tpu7x:2x2x1
jax: 0.10.0
libtpu: 0.0.40
codegen_flags: <defaults>
</compile_context>

<pallas_src>
import math
from functools import partial

import jax
import jax.numpy as jnp
from jax.experimental import pallas as pl
from jax.experimental.pallas import tpu as pltpu


def _logreg_kernel(x_ref, s_ref, b_ref, o_ref, *, k):
    # x_ref: (TR, K*F) folded input tile (native dtype), TR = TN/K folded rows.
    # s_ref: (K_pad, K*F) folded-weight selector: row j holds w in lanes
    #        [j*F, (j+1)*F) and zeros elsewhere (rows >= K are all-zero padding).
    # b_ref: (1, 1) scalar bias in SMEM.
    # o_ref: (K, TR) lane-dense output tile -- samples live in lanes.
    x = x_ref[...]
    if x.dtype != jnp.bfloat16 and x.dtype != jnp.float32:
        x = x.astype(jnp.float32)
    # One MXU contraction computes all K packed samples per folded row at once and
    # lands the logits directly in a lane-dense (K, TR) layout (no in-kernel
    # lane-splitting reshape):  logits[j, r] = sum_f w[f] * X[r*K + j, f].
    logits = jax.lax.dot_general(
        s_ref[...], x, (((1,), (1,)), ((), ())),
        precision=jax.lax.Precision.HIGHEST,
        preferred_element_type=jnp.float32)              # (K_pad, TR), f32 accumulate
    logits = logits[:k, :] + b_ref[0, 0]                 # drop selector padding rows
    o_ref[...] = jax.nn.sigmoid(logits).astype(o_ref.dtype)   # exp/recip on the EUP


def _round_up(v, m):
    return -(-v // m) * m


def _generation_budgets():
    """Returns (target X bytes per grid step, scoped-VMEM limit) for this chip."""
    try:
        vmem_cap = pltpu.get_tpu_info().vmem_capacity_bytes
    except Exception:
        return 4 << 20, 40 << 20            # unknown chip: conservative (v7x-safe)
    if vmem_cap <= (64 << 20):              # v7x-class: 64 MiB VMEM/TC, ~3.2 TB/s HBM
        return 6 << 20, 44 << 20
    return 4 << 20, 96 << 20                # v5e / v6e class (128 MiB physical VMEM)


def _fold_factor(f, itemsize, max_fold_tile_bytes=8 << 20):
    """Samples packed per VMEM row so K*F is a multiple of 128 lanes.

    Falls back to K=1 when F is already lane-aligned, or when F is large and awkward
    (relative lane padding is then tiny but the minimum folded tile would blow up)."""
    if f % 128 == 0:
        return 1
    k = 128 // math.gcd(f, 128)
    if 128 * k * f * itemsize <= max_fold_tile_bytes:   # min tile = 128 lanes * K*F
        return k
    return 1


def logistic_regression(x, w, b, *, row_tile=None):
    """Forward pass of nn.Linear(F, 1) followed by sigmoid.

    x: (N, F) in its native dtype (f32 or bf16, no HBM up-cast),
    w: (1, F) or (F,) nn.Linear weight, b: (1,) bias.  Returns (N, 1) in x.dtype.
    """
    n, f = x.shape
    itemsize = jnp.dtype(x.dtype).itemsize
    step_bytes, vmem_limit = _generation_budgets()

    k = _fold_factor(f, itemsize)
    kf = k * f
    k_pad = _round_up(k, 8)            # pad selector rows to a full sublane group
    lcm = 128 * k                      # TN granularity: 128 output lanes/step * fold

    # ---- byte-based batch tile (bytes per step, not rows) ----------------------
    if row_tile is None:
        tn = max(lcm, (step_bytes // (f * itemsize)) // lcm * lcm)
    else:
        if row_tile % lcm:
            raise ValueError(f"row_tile must be a multiple of {lcm}")
        tn = row_tile
    n_min = _round_up(n, lcm)
    tn = min(tn, n_min)
    # Keep >= 2 grid steps when the batch allows it (pipelining + v7x 2-TC split).
    if n_min // tn < 2 and n_min >= 2 * lcm:
        tn = max(lcm, (n_min // 2) // lcm * lcm)
    # Prefer a nearby tile that divides N exactly over padding+copying X in HBM.
    if n % tn and n % lcm == 0:
        t = tn
        while t >= max(lcm, tn // 2) and n % t:
            t -= lcm
        if t >= max(lcm, tn // 2) and n % t == 0:
            tn = t

    n_pad = _round_up(n, tn)
    grid = (n_pad // tn,)
    tr = tn // k                       # folded rows per step = output lanes per step

    # ---- operands ---------------------------------------------------------------
    if n_pad != n:
        # TODO(synk): a masked tail tile would avoid this extra HBM copy for awkward N.
        x = jnp.pad(x, ((0, n_pad - n), (0, 0)))
    x_folded = x.reshape(n_pad // k, kf)

    compute_dtype = jnp.bfloat16 if x.dtype == jnp.bfloat16 else jnp.float32
    w_row = jnp.asarray(w).reshape(1, f).astype(compute_dtype)
    # Block-diagonal folded-weight selector: S[j, j*F + f] = w[f], zero elsewhere.
    lane_group = jnp.arange(kf) // f
    sel = jnp.arange(k_pad)[:, None] == lane_group[None, :]
    s_wt = jnp.where(sel, jnp.tile(w_row, (1, k)), 0).astype(compute_dtype)
    b2 = jnp.asarray(b).reshape(1, 1).astype(jnp.float32)       # SMEM scalar bias

    cost = pl.CostEstimate(
        flops=2 * n_pad * f * k_pad,
        transcendentals=n_pad,
        bytes_accessed=(n_pad * f * itemsize + n_pad * itemsize
                        + k_pad * kf * jnp.dtype(compute_dtype).itemsize),
    )

    out2d = pl.pallas_call(
        partial(_logreg_kernel, k=k),
        out_shape=jax.ShapeDtypeStruct((k, n_pad // k), x.dtype),
        grid_spec=pltpu.PrefetchScalarGridSpec(
            num_scalar_prefetch=0,
            grid=grid,
            in_specs=[
                pl.BlockSpec((tr, kf), lambda i: (i, 0)),            # folded X tile
                pl.BlockSpec((k_pad, kf), lambda i: (0, 0)),         # weight selector (resident)
                pl.BlockSpec(memory_space=pltpu.MemorySpace.SMEM),   # bias scalar
            ],
            out_specs=pl.BlockSpec((k, tr), lambda i: (0, i)),       # lane-dense logits
        ),
        compiler_params=pltpu.CompilerParams(
            dimension_semantics=("parallel",),     # batch tiles independent -> megacore
            vmem_limit_bytes=vmem_limit,
        ),
        cost_estimate=cost,
    )(x_folded, s_wt, b2)

    # Un-fold: out2d[j, r] is the prediction for sample r*k + j.
    return out2d.T.reshape(n_pad, 1)[:n]


if __name__ == "__main__":
    key = jax.random.PRNGKey(0)
    kx, kw, kb = jax.random.split(key, 3)

    # Logistic regression on F=32 features.  N=1000 exercises the ragged/padded tail,
    # the K=4 lane fold (4*32 = 128 lanes) and a multi-step pipelined grid.
    N, F = 1000, 32
    x = jax.random.normal(kx, (N, F), dtype=jnp.float32)
    w = jax.random.normal(kw, (1, F), dtype=jnp.float32) * 0.1   # nn.Linear(F, 1).weight
    b = jax.random.normal(kb, (1,), dtype=jnp.float32) * 0.1     # nn.Linear(F, 1).bias

    y_hat = logistic_regression(x, w, b)
    jax.block_until_ready(y_hat)
    assert y_hat.shape == (N, 1)

    # Reference check (f32-accurate matmul so the comparison is apples-to-apples).
    logits_ref = jax.lax.dot_general(x, w, (((1,), (1,)), ((), ())),
                                     precision=jax.lax.Precision.HIGHEST) + b
    y_ref = jax.nn.sigmoid(logits_ref)
    assert jnp.allclose(y_hat, y_ref, atol=1e-5, rtol=1e-5)

    print("KERNEL_OK")
</pallas_src>

<mosaic_0001>
module attributes {stable_mosaic.version = 11 : i64} {
  func.func @_logreg_kernel(%arg0: i32, %arg1: memref<128x128xf32, #tpu.memory_space<vmem>>, %arg2: memref<8x128xf32, #tpu.memory_space<vmem>>, %arg3: memref<1x1xf32, #tpu.memory_space<smem>>, %arg4: memref<4x128xf32, #tpu.memory_space<vmem>>) attributes {dimension_semantics = [#tpu.dimension_semantics<parallel>], iteration_bounds = array<i64: 2>, scalar_prefetch = 0 : i64, scratch_operands = 0 : i64, tpu.core_type = #tpu.core_type<tc>, window_params = [{transform_indices = @transform_0, window_bounds = array<i64: 128, 128>}, {pipeline_mode = #tpu.pipeline_mode<synchronous>, transform_indices = @transform_1, window_bounds = array<i64: 8, 128>}, {transform_indices = @transform_2, window_bounds = array<i64: 1, 1>}, {transform_indices = @transform_3, window_bounds = array<i64: 4, 128>}]} {
    %c0 = arith.constant 0 : index
    %c0_0 = arith.constant 0 : index
    %0 = vector.load %arg1[%c0, %c0_0] : memref<128x128xf32, #tpu.memory_space<vmem>>, vector<128x128xf32>
    %c0_1 = arith.constant 0 : index
    %c0_2 = arith.constant 0 : index
    %1 = vector.load %arg2[%c0_1, %c0_2] : memref<8x128xf32, #tpu.memory_space<vmem>>, vector<8x128xf32>
    %cst = arith.constant dense<0.000000e+00> : vector<8x128xf32>
    %2 = tpu.matmul %1, %0, %cst {dimension_numbers = #tpu.dot_dimension_numbers<[1], [1], [0], [0], [0, 0, 1, 0], [], []>, precision = #tpu.contract_precision<fp32>} : vector<8x128xf32>, vector<128x128xf32>, vector<8x128xf32> -> vector<8x128xf32>
    %3 = vector.extract_strided_slice %2 {offsets = [0, 0], sizes = [4, 128], strides = [1, 1]} : vector<8x128xf32> to vector<4x128xf32>
    %c0_3 = arith.constant 0 : index
    %c0_4 = arith.constant 0 : index
    %4 = memref.load %arg3[%c0_3, %c0_4] : memref<1x1xf32, #tpu.memory_space<smem>>
    %5 = vector.broadcast %4 : f32 to vector<4x128xf32>
    %6 = arith.addf %3, %5 : vector<4x128xf32>
    %7 = arith.negf %6 : vector<4x128xf32>
    %8 = math.exp %7 : vector<4x128xf32>
    %cst_5 = arith.constant 1.000000e+00 : f32
    %9 = vector.broadcast %cst_5 : f32 to vector<4x128xf32>
    %10 = arith.addf %9, %8 : vector<4x128xf32>
    %11 = arith.divf %9, %10 : vector<4x128xf32>
    %c0_6 = arith.constant 0 : index
    %c0_7 = arith.constant 0 : index
    %12 = vector.load %arg4[%c0_6, %c0_7] : memref<4x128xf32, #tpu.memory_space<vmem>>, vector<4x128xf32>
    tpu.vector_store %arg4[%c0_6, %c0_7], %11 {strides = array<i32>} : memref<4x128xf32, #tpu.memory_space<vmem>>, vector<4x128xf32>,
    return
  }
  func.func @transform_0(%arg0: i32) -> (i32, i32) {
    %c0_i32 = arith.constant 0 : i32
    %c0_i32_0 = arith.constant 0 : i32
    return %arg0, %c0_i32 : i32, i32
  }
  func.func @transform_1(%arg0: i32) -> (i32, i32) {
    %c0_i32 = arith.constant 0 : i32
    %c0_i32_0 = arith.constant 0 : i32
    %c0_i32_1 = arith.constant 0 : i32
    return %c0_i32, %c0_i32_0 : i32, i32
  }
  func.func @transform_2(%arg0: i32) -> (i32, i32) {
    %c0_i32 = arith.constant 0 : i32
    %c0_i32_0 = arith.constant 0 : i32
    %c0_i32_1 = arith.constant 0 : i32
    return %c0_i32, %c0_i32_0 : i32, i32
  }
  func.func @transform_3(%arg0: i32) -> (i32, i32) {
    %c0_i32 = arith.constant 0 : i32
    %c0_i32_0 = arith.constant 0 : i32
    return %c0_i32, %arg0 : i32, i32
  }
}

</mosaic_0001>

<llo_original>
// kernel: tpu_custom_call.1
$region0: #{tpu_custom_call.1}
  #allocation0 [shape = 'u32[]', space=smem, size = 0x4, offset = 0x4, fixed_abs, tag = 'smem constant byte address 0x4 - core index']
  #allocation1 [shape = 'u32[144,128]{1,0:T(1,128)}', space=vmem, size = 0x12000, scoped, tag = 'internal scratch']
  #allocation2 [shape = 'f32[1,1]{1,0:T(1,128)S(6)}', space=smem, size = 0x200, scoped, tag = 'scoped memory for tpu_custom_call.1']
  %s0 = inlined_call_operand.hbm [shape: f32[256,128], index: 0, kind: input, shape index: {}]
  %s1 = inlined_call_operand.hbm [shape: f32[8,128], index: 1, kind: input, shape index: {}]
  %s2 = inlined_call_operand.<no memory space> [shape: f32[1,1], index: 2, kind: input, shape index: {}]
  %s3 = inlined_call_operand.hbm [shape: f32[4,256], index: 3, kind: output, shape index: {}]
  %s4 = sld [smem:[#allocation0]]
  $region53: #{tpu_custom_call.1} parent=0
    _
  %s6 = ssub.s32 1, %s4
  %s7 = scalar_select 0, %s6, %s4
  %8 = sst [smem:[#allocation2]] %s2
  $region1: #{tpu_custom_call.1} parent=0
    #allocation3 [shape = 'u8[131072]{0}', space=vmem, size = 0x20000, scoped, tag = 'input window, operand 0']
    #allocation4 [shape = 's32[2]{0}', space=sflag, size = 0x8, scoped, tag = 'scoped memory for tpu_custom_call.1']
    #allocation5 [shape = 's32[2]{0}', space=sflag, size = 0x8, scoped, tag = 'scoped memory for tpu_custom_call.1']
    #allocation6 [shape = 'u8[4096]{0}', space=vmem, size = 0x1000, scoped, tag = 'input window, operand 1, single buffered']
    #allocation7 [shape = 's32[1]{0}', space=sflag, size = 0x4, scoped, tag = 'scoped memory for tpu_custom_call.1']
    #allocation8 [shape = 'u8[4096]{0}', space=vmem, size = 0x1000, scoped, tag = 'output window, operand 0']
    %9 = vsyncpa [#allocation4], 0
    %s10 = scalar_lea.sflag [#allocation4], 1
    %11 = vsyncpa %s10, 0
    %12 = vsyncpa [#allocation7], 0
    %13 = vsyncpa [#allocation5], 0
    %s14 = scalar_lea.sflag [#allocation5], 1
    %15 = vsyncpa %s14, 0
    loop: start=0, step=1, limit=4
    $region2: #{tpu_custom_call.1} parent=1 // loop_pre_header
      _
    $region3: #{tpu_custom_call.1} parent=1 // loop_header
      %s17 = sphi 0, %s21
      %p18 = scmp.ge.s32.totalorder %s17, 4
      %s27 = sphi 0, %s29
      %s30 = sphi 0, %s27
      %s31 = sphi 0, %s30
      %s47 = sphi 0, %s31
      %s51 = sphi 0, %s51
      %s53 = sphi 0, %s51
      %s54 = sphi 0, %s53
      %s68 = sphi 0, %s54
      %s72 = sphi 0, %s72
      %s74 = sphi 0, %s72
      %s75 = sphi 0, %s74
      %s89 = sphi 0, %s75
      %s95 = sphi 0, %s97
      %s98 = sphi 0, %s95
      %s99 = sphi 0, %s98
      %s115 = sphi 0, %s99
    $region4: #{tpu_custom_call.1} parent=1 // loop_header_branch
      %20 = sbr.rel (%p18) target = $region8
    $region5: #{tpu_custom_call.1} parent=1 // loop_body
      %s22 = ssub.s32 %s17, 1
      %s23 = ssub.s32 %s17, 2
      %s24 = sadd.s32 %s17, 1
      %s25 = ssub.s32 %s17, %s24
      %p26 = scmp.eq.s32.totalorder %s25, 0
      %s28 = sadd.s32 %s27, 1
      %s29 = scalar_select %p26, %s27, %s28
      %p32 = pneg %p26
      %p33 = scmp.eq.s32.totalorder %s17, 1
      %p34 = por %p32, %p33
      %p35 = scmp.ne.s32.totalorder %s27, %s30
      %p36 = scmp.eq.s32.totalorder %s17, 0
      %p37 = por %p35, %p36
      %p38 = scmp.ne.s32.totalorder %s27, %s30
      %p39 = scmp.eq.s32.totalorder %s22, 1
      %p40 = por %p38, %p39
      %p41 = scmp.ne.s32.totalorder %s30, %s31
      %p42 = scmp.eq.s32.totalorder %s22, 0
      %p43 = por %p41, %p42
      %p44 = scmp.ne.s32.totalorder %s30, %s31
      %p45 = scmp.eq.s32.totalorder %s23, 1
      %p46 = por %p44, %p45
      %p48 = scmp.ne.s32.totalorder %s31, %s47
      %p49 = scmp.eq.s32.totalorder %s23, 0
      %p50 = por %p48, %p49
      %s52 = sadd.s32 %s51, 1
      %p55 = scmp.eq.s32.totalorder %s17, 1
      %p56 = scmp.ne.s32.totalorder %s51, %s53
      %p57 = scmp.eq.s32.totalorder %s17, 0
      %p58 = por %p56, %p57
      %p59 = scmp.ne.s32.totalorder %s51, %s53
      %p60 = scmp.eq.s32.totalorder %s22, 1
      %p61 = por %p59, %p60
      %p62 = scmp.ne.s32.totalorder %s53, %s54
      %p63 = scmp.eq.s32.totalorder %s22, 0
      %p64 = por %p62, %p63
      %p65 = scmp.ne.s32.totalorder %s53, %s54
      %p66 = scmp.eq.s32.totalorder %s23, 1
      %p67 = por %p65, %p66
      %p69 = scmp.ne.s32.totalorder %s54, %s68
      %p70 = scmp.eq.s32.totalorder %s23, 0
      %p71 = por %p69, %p70
      %s73 = sadd.s32 %s72, 1
      %p76 = scmp.eq.s32.totalorder %s17, 1
      %p77 = scmp.ne.s32.totalorder %s72, %s74
      %p78 = scmp.eq.s32.totalorder %s17, 0
      %p79 = por %p77, %p78
      %p80 = scmp.ne.s32.totalorder %s72, %s74
      %p81 = scmp.eq.s32.totalorder %s22, 1
      %p82 = por %p80, %p81
      %p83 = scmp.ne.s32.totalorder %s74, %s75
      %p84 = scmp.eq.s32.totalorder %s22, 0
      %p85 = por %p83, %p84
      %p86 = scmp.ne.s32.totalorder %s74, %s75
      %p87 = scmp.eq.s32.totalorder %s23, 1
      %p88 = por %p86, %p87
      %p90 = scmp.ne.s32.totalorder %s75, %s89
      %p91 = scmp.eq.s32.totalorder %s23, 0
      %p92 = por %p90, %p91
      %s93 = ssub.s32 %s17, %s24
      %p94 = scmp.eq.s32.totalorder %s93, 0
      %s96 = sadd.s32 %s95, 1
      %s97 = scalar_select %p94, %s95, %s96
      %p100 = pneg %p94
      %p101 = scmp.eq.s32.totalorder %s17, 1
      %p102 = por %p100, %p101
      %p103 = scmp.ne.s32.totalorder %s95, %s98
      %p104 = scmp.eq.s32.totalorder %s17, 0
      %p105 = por %p103, %p104
      %p106 = scmp.ne.s32.totalorder %s95, %s98
      %p107 = scmp.eq.s32.totalorder %s22, 1
      %p108 = por %p106, %p107
      %p109 = scmp.ne.s32.totalorder %s98, %s99
      %p110 = scmp.eq.s32.totalorder %s22, 0
      %p111 = por %p109, %p110
      %p112 = scmp.ne.s32.totalorder %s98, %s99
      %p113 = scmp.eq.s32.totalorder %s23, 1
      %p114 = por %p112, %p113
      %p116 = scmp.ne.s32.totalorder %s99, %s115
      %p117 = scmp.eq.s32.totalorder %s23, 0
      %p118 = por %p116, %p117
      %p119 = scmp.le.s32.totalorder 1, %s17
      %p120 = scmp.lt.s32.totalorder %s17, 3
      %p121 = pnand %p119, %p120
      %p122 = pneg %p121
      // Predicated region
      $region9: #{tpu_custom_call.1} parent=5 // pred_check
        _
      $region10: #{tpu_custom_call.1} parent=5 // pred_check_branch
        %124 = sbr.rel (%p121) target = $region12
      $region11: #{tpu_custom_call.1} parent=5 // pred_region
        %s125 = ssub.s32 %s17, 1
        // Predicated region
        $region13: #{tpu_custom_call.1} parent=11 // pred_check
          %p126 = pneg %p64
        $region14: #{tpu_custom_call.1} parent=11 // pred_check_branch
          %128 = sbr.rel (%p126) target = $region16
        $region15: #{tpu_custom_call.1} parent=11 // pred_region
          %s130 = ssub.s32 128, 128
          %131 = vsyncadd [#allocation7], %s130
          %s133 = sshll.u32 [#allocation6], 4
          %s134 = int_to_ptr.vmem [resolvable:$true] %s133
          %136 = dma.hbm_to_vmem [thread:$0]  %s1, 128, %s134, [#allocation7]
        $region16: #{tpu_custom_call.1} parent=11 // pred_fallthru
          _
        // Predicated region
        $region17: #{tpu_custom_call.1} parent=11 // pred_check
          %p137 = pneg %p85
        $region18: #{tpu_custom_call.1} parent=11 // pred_check_branch
          %139 = sbr.rel (%p137) target = $region20
        $region19: #{tpu_custom_call.1} parent=11 // pred_region
          _
        $region20: #{tpu_custom_call.1} parent=11 // pred_fallthru
          _
      $region12: #{tpu_custom_call.1} parent=5 // pred_fallthru
        _
      %p140 = scmp.lt.s32.totalorder %s17, 2
      // Predicated region
      $region21: #{tpu_custom_call.1} parent=5 // pred_check
        %p141 = pneg %p140
      $region22: #{tpu_custom_call.1} parent=5 // pred_check_branch
        %143 = sbr.rel (%p141) target = $region24
      $region23: #{tpu_custom_call.1} parent=5 // pred_region
        // Predicated region
        $region25: #{tpu_custom_call.1} parent=23 // pred_check
          %p144 = pneg %p37
        $region26: #{tpu_custom_call.1} parent=23 // pred_check_branch
          %146 = sbr.rel (%p144) target = $region28
        $region27: #{tpu_custom_call.1} parent=23 // pred_region
          %s147 = sand.u32 %s27, 1
          %s148 = scalar_lea.sflag [#allocation4], %s147
          %s149 = sand.u32 %s27, 1
          %s150 = smul.addr %s149, 128
          %s151 = scalar_lea.vmem [#allocation3], %s150
          %s152 = smul.u32 16, %s17
          %s154 = ssub.s32 2048, 2048
          %155 = vsyncadd %s148, %s154
          %s156 = smul.addr %s152, 128
          %s157 = scalar_lea.hbm %s0, %s156
          %s158 = sshll.u32 %s151, 4
          %s159 = int_to_ptr.vmem [resolvable:$true] %s158
          %164 = dma.hbm_to_vmem [thread:$0]  %s157, 2048, %s159, %s148, 128, 128, 8
        $region28: #{tpu_custom_call.1} parent=23 // pred_fallthru
          _
      $region24: #{tpu_custom_call.1} parent=5 // pred_fallthru
        _
      %p165 = scmp.le.s32.totalorder 1, %s17
      %p166 = scmp.lt.s32.totalorder %s17, 3
      %p167 = pnand %p165, %p166
      %p168 = pneg %p167
      // Predicated region
      $region29: #{tpu_custom_call.1} parent=5 // pred_check
        _
      $region30: #{tpu_custom_call.1} parent=5 // pred_check_branch
        %170 = sbr.rel (%p167) target = $region32
      $region31: #{tpu_custom_call.1} parent=5 // pred_region
        %s171 = ssub.s32 %s17, 1
        %s172 = sand.u32 %s30, 1
        %s173 = scalar_lea.sflag [#allocation4], %s172
        %s174 = sand.u32 %s30, 1
        %s175 = smul.addr %s174, 128
        %s176 = scalar_lea.vmem [#allocation3], %s175
        // Predicated region
        $region33: #{tpu_custom_call.1} parent=31 // pred_check
          %p177 = pneg %p43
        $region34: #{tpu_custom_call.1} parent=31 // pred_check_branch
          %179 = sbr.rel (%p177) target = $region36
        $region35: #{tpu_custom_call.1} parent=31 // pred_region
          %180 = dma.done %s173, 2048
        $region36: #{tpu_custom_call.1} parent=31 // pred_fallthru
          _
        // Predicated region
        $region37: #{tpu_custom_call.1} parent=31 // pred_check
          %p181 = pneg %p64
        $region38: #{tpu_custom_call.1} parent=31 // pred_check_branch
          %183 = sbr.rel (%p181) target = $region40
        $region39: #{tpu_custom_call.1} parent=31 // pred_region
          %184 = dma.done [#allocation7], 128
        $region40: #{tpu_custom_call.1} parent=31 // pred_fallthru
          _
        %s185 = sand.u32 %s30, 1
        %s186 = scalar_lea.sflag [#allocation4], %s185
        %s187 = sand.u32 %s30, 1
        %s188 = smul.addr %s187, 128
        %s189 = scalar_lea.vmem [#allocation3], %s188
        %p190 = pneg %p43
        %p191 = pneg %p40
        %p192 = pneg %p64
        %p193 = pneg %p61
        %p194 = pneg %p85
        %p195 = pneg %p82
        %p196 = pneg %p111
        %p197 = pneg %p108
        %s198 = sand.u32 %s98, 1
        %s199 = scalar_lea.sflag [#allocation5], %s198
        %s200 = sand.u32 %s98, 1
        %s201 = smul.addr %s200, 4
        %s202 = scalar_lea.vmem [#allocation8], %s201
        %s203 = smul.u32 16, %s22
        %v204 = vld [vmem:[%s176] sm:$0xff]
        %v205 = vld [vmem:[%s176 + $0x8] sm:$0xff]
        %v206 = vld [vmem:[%s176 + $0x10] sm:$0xff]
        %v207 = vld [vmem:[%s176 + $0x18] sm:$0xff]
        %v208 = vld [vmem:[%s176 + $0x20] sm:$0xff]
        %v209 = vld [vmem:[%s176 + $0x28] sm:$0xff]
        %v210 = vld [vmem:[%s176 + $0x30] sm:$0xff]
        %v211 = vld [vmem:[%s176 + $0x38] sm:$0xff]
        %v212 = vld [vmem:[%s176 + $0x40] sm:$0xff]
        %v213 = vld [vmem:[%s176 + $0x48] sm:$0xff]
        %v214 = vld [vmem:[%s176 + $0x50] sm:$0xff]
        %v215 = vld [vmem:[%s176 + $0x58] sm:$0xff]
        %v216 = vld [vmem:[%s176 + $0x60] sm:$0xff]
        %v217 = vld [vmem:[%s176 + $0x68] sm:$0xff]
        %v218 = vld [vmem:[%s176 + $0x70] sm:$0xff]
        %v219 = vld [vmem:[%s176 + $0x78] sm:$0xff]
        %v220 = vld [vmem:[#allocation6] sm:$0xff]
        %221 = vmatprep.subr.mxu0 0.0
        %v222 = vand.u32 %v204, 4294901760
        %223 = vmatpush1.xpose.msra.mxu0 %v222
        %224 = vmatprep.subr.mxu0 0.0
        %v225 = vand.u32 %v205, 4294901760
        %226 = vmatpush1.xpose.msra.mxu0 %v225
        %227 = vmatprep.subr.mxu0 0.0
        %v228 = vand.u32 %v206, 4294901760
        %229 = vmatpush1.xpose.msra.mxu0 %v228
        %230 = vmatprep.subr.mxu0 0.0
        %v231 = vand.u32 %v207, 4294901760
        %232 = vmatpush1.xpose.msra.mxu0 %v231
        %233 = vmatprep.subr.mxu0 0.0
        %v234 = vand.u32 %v208, 4294901760
        %235 = vmatpush1.xpose.msra.mxu0 %v234
        %236 = vmatprep.subr.mxu0 0.0
        %v237 = vand.u32 %v209, 4294901760
        %238 = vmatpush1.xpose.msra.mxu0 %v237
        %239 = vmatprep.subr.mxu0 0.0
        %v240 = vand.u32 %v210, 4294901760
        %241 = vmatpush1.xpose.msra.mxu0 %v240
        %242 = vmatprep.subr.mxu0 0.0
        %v243 = vand.u32 %v211, 4294901760
        %244 = vmatpush1.xpose.msra.mxu0 %v243
        %245 = vmatprep.subr.mxu0 0.0
        %v246 = vand.u32 %v212, 4294901760
        %247 = vmatpush1.xpose.msra.mxu0 %v246
        %248 = vmatprep.subr.mxu0 0.0
        %v249 = vand.u32 %v213, 4294901760
        %250 = vmatpush1.xpose.msra.mxu0 %v249
        %251 = vmatprep.subr.mxu0 0.0
        %v252 = vand.u32 %v214, 4294901760
        %253 = vmatpush1.xpose.msra.mxu0 %v252
        %254 = vmatprep.subr.mxu0 0.0
        %v255 = vand.u32 %v215, 4294901760
        %256 = vmatpush1.xpose.msra.mxu0 %v255
        %257 = vmatprep.subr.mxu0 0.0
        %v258 = vand.u32 %v216, 4294901760
        %259 = vmatpush1.xpose.msra.mxu0 %v258
        %260 = vmatprep.subr.mxu0 0.0
        %v261 = vand.u32 %v217, 4294901760
        %262 = vmatpush1.xpose.msra.mxu0 %v261
        %263 = vmatprep.subr.mxu0 0.0
        %v264 = vand.u32 %v218, 4294901760
        %265 = vmatpush1.xpose.msra.mxu0 %v264
        %266 = vmatprep.subr.mxu0 0.0
        %v267 = vand.u32 %v219, 4294901760
        %268 = vmatpush1.xpose.msra.mxu0 %v267
        %269 = vmatprep.subr.mxu0 0.0
        %270 = vmatpush1.xpose.msra.mxu0 0.0
        %271 = vmatprep.subr.mxu0 0.0
        %272 = vmatpush1.xpose.msra.mxu0 0.0
        %273 = vmatprep.subr.mxu0 0.0
        %274 = vmatpush1.xpose.msra.mxu0 0.0
        %275 = vmatprep.subr.mxu0 0.0
        %276 = vmatpush1.xpose.msra.mxu0 0.0
        %277 = vmatprep.subr.mxu0 0.0
        %278 = vmatpush1.xpose.msra.mxu0 0.0
        %279 = vmatprep.subr.mxu0 0.0
        %280 = vmatpush1.xpose.msra.mxu0 0.0
        %281 = vmatprep.subr.mxu0 0.0
        %282 = vmatpush1.xpose.msra.mxu0 0.0
        %283 = vmatprep.subr.mxu0 0.0
        %284 = vmatpush1.xpose.msra.mxu0 0.0
        %285 = vmatprep.subr.mxu0 0.0
        %286 = vmatpush1.xpose.msra.mxu0 0.0
        %287 = vmatprep.subr.mxu0 0.0
        %288 = vmatpush1.xpose.msra.mxu0 0.0
        %289 = vmatprep.subr.mxu0 0.0
        %290 = vmatpush1.xpose.msra.mxu0 0.0
        %291 = vmatprep.subr.mxu0 0.0
        %292 = vmatpush1.xpose.msra.mxu0 0.0
        %293 = vmatprep.subr.mxu0 0.0
        %294 = vmatpush1.xpose.msra.mxu0 0.0
        %295 = vmatprep.subr.mxu0 0.0
        %296 = vmatpush1.xpose.msra.mxu0 0.0
        %297 = vmatprep.subr.mxu0 0.0
        %298 = vmatpush1.xpose.msra.mxu0 0.0
        %299 = vmatprep.subr.mxu0 0.0
        %300 = vmatpush1.xpose.msra.mxu0 0.0
        %301 = vmatprep.mubr.f32.mxu0 0.0
        %v302 = vand.u32 %v220, 4294901760
        %v303 = vsub.f32 %v220, %v302
        %v304 = vand.u32 %v303, 4294901760
        %v305 = vsub.f32 %v303, %v304
        %v306 = vand.u32 %v305, 4294901760
        %307 = vmatmul.mubr.f32.gmra.mrb[0].mxu0 %v306
        %v308 = vpop.f32.mrb[0].mxu0
        %v309 = vadd.f32 0.0, %v308
        %v310 = vpop.f32.mrb[0].mxu0
        %311 = vdwg.mxu0
        %312 = vmatprep.subr.mxu0 0.0
        %v313 = vand.u32 %v204, 4294901760
        %v314 = vsub.f32 %v204, %v313
        %v315 = vand.u32 %v314, 4294901760
        %v316 = vsub.f32 %v314, %v315
        %v317 = vand.u32 %v316, 4294901760
        %318 = vmatpush1.xpose.msra.mxu0 %v317
        %319 = vmatprep.subr.mxu0 0.0
        %v320 = vand.u32 %v205, 4294901760
        %v321 = vsub.f32 %v205, %v320
        %v322 = vand.u32 %v321, 4294901760
        %v323 = vsub.f32 %v321, %v322
        %v324 = vand.u32 %v323, 4294901760
        %325 = vmatpush1.xpose.msra.mxu0 %v324
        %326 = vmatprep.subr.mxu0 0.0
        %v327 = vand.u32 %v206, 4294901760
        %v328 = vsub.f32 %v206, %v327
        %v329 = vand.u32 %v328, 4294901760
        %v330 = vsub.f32 %v328, %v329
        %v331 = vand.u32 %v330, 4294901760
        %332 = vmatpush1.xpose.msra.mxu0 %v331
        %333 = vmatprep.subr.mxu0 0.0
        %v334 = vand.u32 %v207, 4294901760
        %v335 = vsub.f32 %v207, %v334
        %v336 = vand.u32 %v335, 4294901760
        %v337 = vsub.f32 %v335, %v336
        %v338 = vand.u32 %v337, 4294901760
        %339 = vmatpush1.xpose.msra.mxu0 %v338
        %340 = vmatprep.subr.mxu0 0.0
        %v341 = vand.u32 %v208, 4294901760
        %v342 = vsub.f32 %v208, %v341
        %v343 = vand.u32 %v342, 4294901760
        %v344 = vsub.f32 %v342, %v343
        %v345 = vand.u32 %v344, 4294901760
        %346 = vmatpush1.xpose.msra.mxu0 %v345
        %347 = vmatprep.subr.mxu0 0.0
        %v348 = vand.u32 %v209, 4294901760
        %v349 = vsub.f32 %v209, %v348
        %v350 = vand.u32 %v349, 4294901760
        %v351 = vsub.f32 %v349, %v350
        %v352 = vand.u32 %v351, 4294901760
        %353 = vmatpush1.xpose.msra.mxu0 %v352
        %354 = vmatprep.subr.mxu0 0.0
        %v355 = vand.u32 %v210, 4294901760
        %v356 = vsub.f32 %v210, %v355
        %v357 = vand.u32 %v356, 4294901760
        %v358 = vsub.f32 %v356, %v357
        %v359 = vand.u32 %v358, 4294901760
        %360 = vmatpush1.xpose.msra.mxu0 %v359
        %361 = vmatprep.subr.mxu0 0.0
        %v362 = vand.u32 %v211, 4294901760
        %v363 = vsub.f32 %v211, %v362
        %v364 = vand.u32 %v363, 4294901760
        %v365 = vsub.f32 %v363, %v364
        %v366 = vand.u32 %v365, 4294901760
        %367 = vmatpush1.xpose.msra.mxu0 %v366
        %368 = vmatprep.subr.mxu0 0.0
        %v369 = vand.u32 %v212, 4294901760
        %v370 = vsub.f32 %v212, %v369
        %v371 = vand.u32 %v370, 4294901760
        %v372 = vsub.f32 %v370, %v371
        %v373 = vand.u32 %v372, 4294901760
        %374 = vmatpush1.xpose.msra.mxu0 %v373
        %375 = vmatprep.subr.mxu0 0.0
        %v376 = vand.u32 %v213, 4294901760
        %v377 = vsub.f32 %v213, %v376
        %v378 = vand.u32 %v377, 4294901760
        %v379 = vsub.f32 %v377, %v378
        %v380 = vand.u32 %v379, 4294901760
        %381 = vmatpush1.xpose.msra.mxu0 %v380
        %382 = vmatprep.subr.mxu0 0.0
        %v383 = vand.u32 %v214, 4294901760
        %v384 = vsub.f32 %v214, %v383
        %v385 = vand.u32 %v384, 4294901760
        %v386 = vsub.f32 %v384, %v385
        %v387 = vand.u32 %v386, 4294901760
        %388 = vmatpush1.xpose.msra.mxu0 %v387
        %389 = vmatprep.subr.mxu0 0.0
        %v390 = vand.u32 %v215, 4294901760
        %v391 = vsub.f32 %v215, %v390
        %v392 = vand.u32 %v391, 4294901760
        %v393 = vsub.f32 %v391, %v392
        %v394 = vand.u32 %v393, 4294901760
        %395 = vmatpush1.xpose.msra.mxu0 %v394
        %396 = vmatprep.subr.mxu0 0.0
        %v397 = vand.u32 %v216, 4294901760
        %v398 = vsub.f32 %v216, %v397
        %v399 = vand.u32 %v398, 4294901760
        %v400 = vsub.f32 %v398, %v399
        %v401 = vand.u32 %v400, 4294901760
        %402 = vmatpush1.xpose.msra.mxu0 %v401
        %403 = vmatprep.subr.mxu0 0.0
        %v404 = vand.u32 %v217, 4294901760
        %v405 = vsub.f32 %v217, %v404
        %v406 = vand.u32 %v405, 4294901760
        %v407 = vsub.f32 %v405, %v406
        %v408 = vand.u32 %v407, 4294901760
        %409 = vmatpush1.xpose.msra.mxu0 %v408
        %410 = vmatprep.subr.mxu0 0.0
        %v411 = vand.u32 %v218, 4294901760
        %v412 = vsub.f32 %v218, %v411
        %v413 = vand.u32 %v412, 4294901760
        %v414 = vsub.f32 %v412, %v413
        %v415 = vand.u32 %v414, 4294901760
        %416 = vmatpush1.xpose.msra.mxu0 %v415
        %417 = vmatprep.subr.mxu0 0.0
        %v418 = vand.u32 %v219, 4294901760
        %v419 = vsub.f32 %v219, %v418
        %v420 = vand.u32 %v419, 4294901760
        %v421 = vsub.f32 %v419, %v420
        %v422 = vand.u32 %v421, 4294901760
        %423 = vmatpush1.xpose.msra.mxu0 %v422
        %424 = vmatprep.subr.mxu0 0.0
        %425 = vmatpush1.xpose.msra.mxu0 0.0
        %426 = vmatprep.subr.mxu0 0.0
        %427 = vmatpush1.xpose.msra.mxu0 0.0
        %428 = vmatprep.subr.mxu0 0.0
        %429 = vmatpush1.xpose.msra.mxu0 0.0
        %430 = vmatprep.subr.mxu0 0.0
        %431 = vmatpush1.xpose.msra.mxu0 0.0
        %432 = vmatprep.subr.mxu0 0.0
        %433 = vmatpush1.xpose.msra.mxu0 0.0
        %434 = vmatprep.subr.mxu0 0.0
        %435 = vmatpush1.xpose.msra.mxu0 0.0
        %436 = vmatprep.subr.mxu0 0.0
        %437 = vmatpush1.xpose.msra.mxu0 0.0
        %438 = vmatprep.subr.mxu0 0.0
        %439 = vmatpush1.xpose.msra.mxu0 0.0
        %440 = vmatprep.subr.mxu0 0.0
        %441 = vmatpush1.xpose.msra.mxu0 0.0
        %442 = vmatprep.subr.mxu0 0.0
        %443 = vmatpush1.xpose.msra.mxu0 0.0
        %444 = vmatprep.subr.mxu0 0.0
        %445 = vmatpush1.xpose.msra.mxu0 0.0
        %446 = vmatprep.subr.mxu0 0.0
        %447 = vmatpush1.xpose.msra.mxu0 0.0
        %448 = vmatprep.subr.mxu0 0.0
        %449 = vmatpush1.xpose.msra.mxu0 0.0
        %450 = vmatprep.subr.mxu0 0.0
        %451 = vmatpush1.xpose.msra.mxu0 0.0
        %452 = vmatprep.subr.mxu0 0.0
        %453 = vmatpush1.xpose.msra.mxu0 0.0
        %454 = vmatprep.subr.mxu0 0.0
        %455 = vmatpush1.xpose.msra.mxu0 0.0
        %456 = vmatprep.mubr.f32.mxu0 0.0
        %v457 = vand.u32 %v220, 4294901760
        %458 = vmatmul.mubr.f32.gmra.mrb[0].mxu0 %v457
        %v459 = vpop.f32.mrb[0].mxu0
        %v460 = vadd.f32 %v309, %v459
        %v461 = vpop.f32.mrb[0].mxu0
        %462 = vdwg.mxu0
        %463 = vmatprep.subr.mxu0 0.0
        %v464 = vand.u32 %v204, 4294901760
        %v465 = vsub.f32 %v204, %v464
        %466 = vmatpush1.xpose.msra.mxu0 %v465
        %467 = vmatprep.subr.mxu0 0.0
        %v468 = vand.u32 %v205, 4294901760
        %v469 = vsub.f32 %v205, %v468
        %470 = vmatpush1.xpose.msra.mxu0 %v469
        %471 = vmatprep.subr.mxu0 0.0
        %v472 = vand.u32 %v206, 4294901760
        %v473 = vsub.f32 %v206, %v472
        %474 = vmatpush1.xpose.msra.mxu0 %v473
        %475 = vmatprep.subr.mxu0 0.0
        %v476 = vand.u32 %v207, 4294901760
        %v477 = vsub.f32 %v207, %v476
        %478 = vmatpush1.xpose.msra.mxu0 %v477
        %479 = vmatprep.subr.mxu0 0.0
        %v480 = vand.u32 %v208, 4294901760
        %v481 = vsub.f32 %v208, %v480
        %482 = vmatpush1.xpose.msra.mxu0 %v481
        %483 = vmatprep.subr.mxu0 0.0
        %v484 = vand.u32 %v209, 4294901760
        %v485 = vsub.f32 %v209, %v484
        %486 = vmatpush1.xpose.msra.mxu0 %v485
        %487 = vmatprep.subr.mxu0 0.0
        %v488 = vand.u32 %v210, 4294901760
        %v489 = vsub.f32 %v210, %v488
        %490 = vmatpush1.xpose.msra.mxu0 %v489
        %491 = vmatprep.subr.mxu0 0.0
        %v492 = vand.u32 %v211, 4294901760
        %v493 = vsub.f32 %v211, %v492
        %494 = vmatpush1.xpose.msra.mxu0 %v493
        %495 = vmatprep.subr.mxu0 0.0
        %v496 = vand.u32 %v212, 4294901760
        %v497 = vsub.f32 %v212, %v496
        %498 = vmatpush1.xpose.msra.mxu0 %v497
        %499 = vmatprep.subr.mxu0 0.0
        %v500 = vand.u32 %v213, 4294901760
        %v501 = vsub.f32 %v213, %v500
        %502 = vmatpush1.xpose.msra.mxu0 %v501
        %503 = vmatprep.subr.mxu0 0.0
        %v504 = vand.u32 %v214, 4294901760
        %v505 = vsub.f32 %v214, %v504
        %506 = vmatpush1.xpose.msra.mxu0 %v505
        %507 = vmatprep.subr.mxu0 0.0
        %v508 = vand.u32 %v215, 4294901760
        %v509 = vsub.f32 %v215, %v508
        %510 = vmatpush1.xpose.msra.mxu0 %v509
        %511 = vmatprep.subr.mxu0 0.0
        %v512 = vand.u32 %v216, 4294901760
        %v513 = vsub.f32 %v216, %v512
        %514 = vmatpush1.xpose.msra.mxu0 %v513
        %515 = vmatprep.subr.mxu0 0.0
        %v516 = vand.u32 %v217, 4294901760
        %v517 = vsub.f32 %v217, %v516
        %518 = vmatpush1.xpose.msra.mxu0 %v517
        %519 = vmatprep.subr.mxu0 0.0
        %v520 = vand.u32 %v218, 4294901760
        %v521 = vsub.f32 %v218, %v520
        %522 = vmatpush1.xpose.msra.mxu0 %v521
        %523 = vmatprep.subr.mxu0 0.0
        %v524 = vand.u32 %v219, 4294901760
        %v525 = vsub.f32 %v219, %v524
        %526 = vmatpush1.xpose.msra.mxu0 %v525
        %527 = vmatprep.subr.mxu0 0.0
        %528 = vmatpush1.xpose.msra.mxu0 0.0
        %529 = vmatprep.subr.mxu0 0.0
        %530 = vmatpush1.xpose.msra.mxu0 0.0
        %531 = vmatprep.subr.mxu0 0.0
        %532 = vmatpush1.xpose.msra.mxu0 0.0
        %533 = vmatprep.subr.mxu0 0.0
        %534 = vmatpush1.xpose.msra.mxu0 0.0
        %535 = vmatprep.subr.mxu0 0.0
        %536 = vmatpush1.xpose.msra.mxu0 0.0
        %537 = vmatprep.subr.mxu0 0.0
        %538 = vmatpush1.xpose.msra.mxu0 0.0
        %539 = vmatprep.subr.mxu0 0.0
        %540 = vmatpush1.xpose.msra.mxu0 0.0
        %541 = vmatprep.subr.mxu0 0.0
        %542 = vmatpush1.xpose.msra.mxu0 0.0
        %543 = vmatprep.subr.mxu0 0.0
        %544 = vmatpush1.xpose.msra.mxu0 0.0
        %545 = vmatprep.subr.mxu0 0.0
        %546 = vmatpush1.xpose.msra.mxu0 0.0
        %547 = vmatprep.subr.mxu0 0.0
        %548 = vmatpush1.xpose.msra.mxu0 0.0
        %549 = vmatprep.subr.mxu0 0.0
        %550 = vmatpush1.xpose.msra.mxu0 0.0
        %551 = vmatprep.subr.mxu0 0.0
        %552 = vmatpush1.xpose.msra.mxu0 0.0
        %553 = vmatprep.subr.mxu0 0.0
        %554 = vmatpush1.xpose.msra.mxu0 0.0
        %555 = vmatprep.subr.mxu0 0.0
        %556 = vmatpush1.xpose.msra.mxu0 0.0
        %557 = vmatprep.subr.mxu0 0.0
        %558 = vmatpush1.xpose.msra.mxu0 0.0
        %559 = vmatprep.mubr.f32.mxu0 0.0
        %v560 = vand.u32 %v220, 4294901760
        %v561 = vsub.f32 %v220, %v560
        %562 = vmatmul.mubr.f32.gmra.mrb[0].mxu0 %v561
        %v563 = vpop.f32.mrb[0].mxu0
        %v564 = vadd.f32 %v460, %v563
        %v565 = vpop.f32.mrb[0].mxu0
        %566 = vdwg.mxu0
        %567 = vmatprep.subr.mxu0 0.0
        %v568 = vand.u32 %v204, 4294901760
        %569 = vmatpush1.xpose.msra.mxu0 %v568
        %570 = vmatprep.subr.mxu0 0.0
        %v571 = vand.u32 %v205, 4294901760
        %572 = vmatpush1.xpose.msra.mxu0 %v571
        %573 = vmatprep.subr.mxu0 0.0
        %v574 = vand.u32 %v206, 4294901760
        %575 = vmatpush1.xpose.msra.mxu0 %v574
        %576 = vmatprep.subr.mxu0 0.0
        %v577 = vand.u32 %v207, 4294901760
        %578 = vmatpush1.xpose.msra.mxu0 %v577
        %579 = vmatprep.subr.mxu0 0.0
        %v580 = vand.u32 %v208, 4294901760
        %581 = vmatpush1.xpose.msra.mxu0 %v580
        %582 = vmatprep.subr.mxu0 0.0
        %v583 = vand.u32 %v209, 4294901760
        %584 = vmatpush1.xpose.msra.mxu0 %v583
        %585 = vmatprep.subr.mxu0 0.0
        %v586 = vand.u32 %v210, 4294901760
        %587 = vmatpush1.xpose.msra.mxu0 %v586
        %588 = vmatprep.subr.mxu0 0.0
        %v589 = vand.u32 %v211, 4294901760
        %590 = vmatpush1.xpose.msra.mxu0 %v589
        %591 = vmatprep.subr.mxu0 0.0
        %v592 = vand.u32 %v212, 4294901760
        %593 = vmatpush1.xpose.msra.mxu0 %v592
        %594 = vmatprep.subr.mxu0 0.0
        %v595 = vand.u32 %v213, 4294901760
        %596 = vmatpush1.xpose.msra.mxu0 %v595
        %597 = vmatprep.subr.mxu0 0.0
        %v598 = vand.u32 %v214, 4294901760
        %599 = vmatpush1.xpose.msra.mxu0 %v598
        %600 = vmatprep.subr.mxu0 0.0
        %v601 = vand.u32 %v215, 4294901760
        %602 = vmatpush1.xpose.msra.mxu0 %v601
        %603 = vmatprep.subr.mxu0 0.0
        %v604 = vand.u32 %v216, 4294901760
        %605 = vmatpush1.xpose.msra.mxu0 %v604
        %606 = vmatprep.subr.mxu0 0.0
        %v607 = vand.u32 %v217, 4294901760
        %608 = vmatpush1.xpose.msra.mxu0 %v607
        %609 = vmatprep.subr.mxu0 0.0
        %v610 = vand.u32 %v218, 4294901760
        %611 = vmatpush1.xpose.msra.mxu0 %v610
        %612 = vmatprep.subr.mxu0 0.0
        %v613 = vand.u32 %v219, 4294901760
        %614 = vmatpush1.xpose.msra.mxu0 %v613
        %615 = vmatprep.subr.mxu0 0.0
        %616 = vmatpush1.xpose.msra.mxu0 0.0
        %617 = vmatprep.subr.mxu0 0.0
        %618 = vmatpush1.xpose.msra.mxu0 0.0
        %619 = vmatprep.subr.mxu0 0.0
        %620 = vmatpush1.xpose.msra.mxu0 0.0
        %621 = vmatprep.subr.mxu0 0.0
        %622 = vmatpush1.xpose.msra.mxu0 0.0
        %623 = vmatprep.subr.mxu0 0.0
        %624 = vmatpush1.xpose.msra.mxu0 0.0
        %625 = vmatprep.subr.mxu0 0.0
        %626 = vmatpush1.xpose.msra.mxu0 0.0
        %627 = vmatprep.subr.mxu0 0.0
        %628 = vmatpush1.xpose.msra.mxu0 0.0
        %629 = vmatprep.subr.mxu0 0.0
        %630 = vmatpush1.xpose.msra.mxu0 0.0
        %631 = vmatprep.subr.mxu0 0.0
        %632 = vmatpush1.xpose.msra.mxu0 0.0
        %633 = vmatprep.subr.mxu0 0.0
        %634 = vmatpush1.xpose.msra.mxu0 0.0
        %635 = vmatprep.subr.mxu0 0.0
        %636 = vmatpush1.xpose.msra.mxu0 0.0
        %637 = vmatprep.subr.mxu0 0.0
        %638 = vmatpush1.xpose.msra.mxu0 0.0
        %639 = vmatprep.subr.mxu0 0.0
        %640 = vmatpush1.xpose.msra.mxu0 0.0
        %641 = vmatprep.subr.mxu0 0.0
        %642 = vmatpush1.xpose.msra.mxu0 0.0
        %643 = vmatprep.subr.mxu0 0.0
        %644 = vmatpush1.xpose.msra.mxu0 0.0
        %645 = vmatprep.subr.mxu0 0.0
        %646 = vmatpush1.xpose.msra.mxu0 0.0
        %647 = vmatprep.mubr.f32.mxu0 0.0
        %v648 = vand.u32 %v220, 4294901760
        %v649 = vsub.f32 %v220, %v648
        %v650 = vand.u32 %v649, 4294901760
        %651 = vmatmul.mubr.f32.gmra.mrb[0].mxu0 %v650
        %v652 = vpop.f32.mrb[0].mxu0
        %v653 = vadd.f32 %v564, %v652
        %v654 = vpop.f32.mrb[0].mxu0
        %655 = vdwg.mxu0
        %656 = vmatprep.subr.mxu0 0.0
        %v657 = vand.u32 %v204, 4294901760
        %v658 = vsub.f32 %v204, %v657
        %v659 = vand.u32 %v658, 4294901760
        %660 = vmatpush1.xpose.msra.mxu0 %v659
        %661 = vmatprep.subr.mxu0 0.0
        %v662 = vand.u32 %v205, 4294901760
        %v663 = vsub.f32 %v205, %v662
        %v664 = vand.u32 %v663, 4294901760
        %665 = vmatpush1.xpose.msra.mxu0 %v664
        %666 = vmatprep.subr.mxu0 0.0
        %v667 = vand.u32 %v206, 4294901760
        %v668 = vsub.f32 %v206, %v667
        %v669 = vand.u32 %v668, 4294901760
        %670 = vmatpush1.xpose.msra.mxu0 %v669
        %671 = vmatprep.subr.mxu0 0.0
        %v672 = vand.u32 %v207, 4294901760
        %v673 = vsub.f32 %v207, %v672
        %v674 = vand.u32 %v673, 4294901760
        %675 = vmatpush1.xpose.msra.mxu0 %v674
        %676 = vmatprep.subr.mxu0 0.0
        %v677 = vand.u32 %v208, 4294901760
        %v678 = vsub.f32 %v208, %v677
        %v679 = vand.u32 %v678, 4294901760
        %680 = vmatpush1.xpose.msra.mxu0 %v679
        %681 = vmatprep.subr.mxu0 0.0
        %v682 = vand.u32 %v209, 4294901760
        %v683 = vsub.f32 %v209, %v682
        %v684 = vand.u32 %v683, 4294901760
        %685 = vmatpush1.xpose.msra.mxu0 %v684
        %686 = vmatprep.subr.mxu0 0.0
        %v687 = vand.u32 %v210, 4294901760
        %v688 = vsub.f32 %v210, %v687
        %v689 = vand.u32 %v688, 4294901760
        %690 = vmatpush1.xpose.msra.mxu0 %v689
        %691 = vmatprep.subr.mxu0 0.0
        %v692 = vand.u32 %v211, 4294901760
        %v693 = vsub.f32 %v211, %v692
        %v694 = vand.u32 %v693, 4294901760
        %695 = vmatpush1.xpose.msra.mxu0 %v694
        %696 = vmatprep.subr.mxu0 0.0
        %v697 = vand.u32 %v212, 4294901760
        %v698 = vsub.f32 %v212, %v697
        %v699 = vand.u32 %v698, 4294901760
        %700 = vmatpush1.xpose.msra.mxu0 %v699
        %701 = vmatprep.subr.mxu0 0.0
        %v702 = vand.u32 %v213, 4294901760
        %v703 = vsub.f32 %v213, %v702
        %v704 = vand.u32 %v703, 4294901760
        %705 = vmatpush1.xpose.msra.mxu0 %v704
        %706 = vmatprep.subr.mxu0 0.0
        %v707 = vand.u32 %v214, 4294901760
        %v708 = vsub.f32 %v214, %v707
        %v709 = vand.u32 %v708, 4294901760
        %710 = vmatpush1.xpose.msra.mxu0 %v709
        %711 = vmatprep.subr.mxu0 0.0
        %v712 = vand.u32 %v215, 4294901760
        %v713 = vsub.f32 %v215, %v712
        %v714 = vand.u32 %v713, 4294901760
        %715 = vmatpush1.xpose.msra.mxu0 %v714
        %716 = vmatprep.subr.mxu0 0.0
        %v717 = vand.u32 %v216, 4294901760
        %v718 = vsub.f32 %v216, %v717
        %v719 = vand.u32 %v718, 4294901760
        %720 = vmatpush1.xpose.msra.mxu0 %v719
        %721 = vmatprep.subr.mxu0 0.0
        %v722 = vand.u32 %v217, 4294901760
        %v723 = vsub.f32 %v217, %v722
        %v724 = vand.u32 %v723, 4294901760
        %725 = vmatpush1.xpose.msra.mxu0 %v724
        %726 = vmatprep.subr.mxu0 0.0
        %v727 = vand.u32 %v218, 4294901760
        %v728 = vsub.f32 %v218, %v727
        %v729 = vand.u32 %v728, 4294901760
        %730 = vmatpush1.xpose.msra.mxu0 %v729
        %731 = vmatprep.subr.mxu0 0.0
        %v732 = vand.u32 %v219, 4294901760
        %v733 = vsub.f32 %v219, %v732
        %v734 = vand.u32 %v733, 4294901760
        %735 = vmatpush1.xpose.msra.mxu0 %v734
        %736 = vmatprep.subr.mxu0 0.0
        %737 = vmatpush1.xpose.msra.mxu0 0.0
        %738 = vmatprep.subr.mxu0 0.0
        %739 = vmatpush1.xpose.msra.mxu0 0.0
        %740 = vmatprep.subr.mxu0 0.0
        %741 = vmatpush1.xpose.msra.mxu0 0.0
        %742 = vmatprep.subr.mxu0 0.0
        %743 = vmatpush1.xpose.msra.mxu0 0.0
        %744 = vmatprep.subr.mxu0 0.0
        %745 = vmatpush1.xpose.msra.mxu0 0.0
        %746 = vmatprep.subr.mxu0 0.0
        %747 = vmatpush1.xpose.msra.mxu0 0.0
        %748 = vmatprep.subr.mxu0 0.0
        %749 = vmatpush1.xpose.msra.mxu0 0.0
        %750 = vmatprep.subr.mxu0 0.0
        %751 = vmatpush1.xpose.msra.mxu0 0.0
        %752 = vmatprep.subr.mxu0 0.0
        %753 = vmatpush1.xpose.msra.mxu0 0.0
        %754 = vmatprep.subr.mxu0 0.0
        %755 = vmatpush1.xpose.msra.mxu0 0.0
        %756 = vmatprep.subr.mxu0 0.0
        %757 = vmatpush1.xpose.msra.mxu0 0.0
        %758 = vmatprep.subr.mxu0 0.0
        %759 = vmatpush1.xpose.msra.mxu0 0.0
        %760 = vmatprep.subr.mxu0 0.0
        %761 = vmatpush1.xpose.msra.mxu0 0.0
        %762 = vmatprep.subr.mxu0 0.0
        %763 = vmatpush1.xpose.msra.mxu0 0.0
        %764 = vmatprep.subr.mxu0 0.0
        %765 = vmatpush1.xpose.msra.mxu0 0.0
        %766 = vmatprep.subr.mxu0 0.0
        %767 = vmatpush1.xpose.msra.mxu0 0.0
        %768 = vmatprep.mubr.f32.mxu0 0.0
        %v769 = vand.u32 %v220, 4294901760
        %770 = vmatmul.mubr.f32.gmra.mrb[0].mxu0 %v769
        %v771 = vpop.f32.mrb[0].mxu0
        %v772 = vadd.f32 %v653, %v771
        %v773 = vpop.f32.mrb[0].mxu0
        %774 = vdwg.mxu0
        %775 = vmatprep.subr.mxu0 0.0
        %v776 = vand.u32 %v204, 4294901760
        %777 = vmatpush1.xpose.msra.mxu0 %v776
        %778 = vmatprep.subr.mxu0 0.0
        %v779 = vand.u32 %v205, 4294901760
        %780 = vmatpush1.xpose.msra.mxu0 %v779
        %781 = vmatprep.subr.mxu0 0.0
        %v782 = vand.u32 %v206, 4294901760
        %783 = vmatpush1.xpose.msra.mxu0 %v782
        %784 = vmatprep.subr.mxu0 0.0
        %v785 = vand.u32 %v207, 4294901760
        %786 = vmatpush1.xpose.msra.mxu0 %v785
        %787 = vmatprep.subr.mxu0 0.0
        %v788 = vand.u32 %v208, 4294901760
        %789 = vmatpush1.xpose.msra.mxu0 %v788
        %790 = vmatprep.subr.mxu0 0.0
        %v791 = vand.u32 %v209, 4294901760
        %792 = vmatpush1.xpose.msra.mxu0 %v791
        %793 = vmatprep.subr.mxu0 0.0
        %v794 = vand.u32 %v210, 4294901760
        %795 = vmatpush1.xpose.msra.mxu0 %v794
        %796 = vmatprep.subr.mxu0 0.0
        %v797 = vand.u32 %v211, 4294901760
        %798 = vmatpush1.xpose.msra.mxu0 %v797
        %799 = vmatprep.subr.mxu0 0.0
        %v800 = vand.u32 %v212, 4294901760
        %801 = vmatpush1.xpose.msra.mxu0 %v800
        %802 = vmatprep.subr.mxu0 0.0
        %v803 = vand.u32 %v213, 4294901760
        %804 = vmatpush1.xpose.msra.mxu0 %v803
        %805 = vmatprep.subr.mxu0 0.0
        %v806 = vand.u32 %v214, 4294901760
        %807 = vmatpush1.xpose.msra.mxu0 %v806
        %808 = vmatprep.subr.mxu0 0.0
        %v809 = vand.u32 %v215, 4294901760
        %810 = vmatpush1.xpose.msra.mxu0 %v809
        %811 = vmatprep.subr.mxu0 0.0
        %v812 = vand.u32 %v216, 4294901760
        %813 = vmatpush1.xpose.msra.mxu0 %v812
        %814 = vmatprep.subr.mxu0 0.0
        %v815 = vand.u32 %v217, 4294901760
        %816 = vmatpush1.xpose.msra.mxu0 %v815
        %817 = vmatprep.subr.mxu0 0.0
        %v818 = vand.u32 %v218, 4294901760
        %819 = vmatpush1.xpose.msra.mxu0 %v818
        %820 = vmatprep.subr.mxu0 0.0
        %v821 = vand.u32 %v219, 4294901760
        %822 = vmatpush1.xpose.msra.mxu0 %v821
        %823 = vmatprep.subr.mxu0 0.0
        %824 = vmatpush1.xpose.msra.mxu0 0.0
        %825 = vmatprep.subr.mxu0 0.0
        %826 = vmatpush1.xpose.msra.mxu0 0.0
        %827 = vmatprep.subr.mxu0 0.0
        %828 = vmatpush1.xpose.msra.mxu0 0.0
        %829 = vmatprep.subr.mxu0 0.0
        %830 = vmatpush1.xpose.msra.mxu0 0.0
        %831 = vmatprep.subr.mxu0 0.0
        %832 = vmatpush1.xpose.msra.mxu0 0.0
        %833 = vmatprep.subr.mxu0 0.0
        %834 = vmatpush1.xpose.msra.mxu0 0.0
        %835 = vmatprep.subr.mxu0 0.0
        %836 = vmatpush1.xpose.msra.mxu0 0.0
        %837 = vmatprep.subr.mxu0 0.0
        %838 = vmatpush1.xpose.msra.mxu0 0.0
        %839 = vmatprep.subr.mxu0 0.0
        %840 = vmatpush1.xpose.msra.mxu0 0.0
        %841 = vmatprep.subr.mxu0 0.0
        %842 = vmatpush1.xpose.msra.mxu0 0.0
        %843 = vmatprep.subr.mxu0 0.0
        %844 = vmatpush1.xpose.msra.mxu0 0.0
        %845 = vmatprep.subr.mxu0 0.0
        %846 = vmatpush1.xpose.msra.mxu0 0.0
        %847 = vmatprep.subr.mxu0 0.0
        %848 = vmatpush1.xpose.msra.mxu0 0.0
        %849 = vmatprep.subr.mxu0 0.0
        %850 = vmatpush1.xpose.msra.mxu0 0.0
        %851 = vmatprep.subr.mxu0 0.0
        %852 = vmatpush1.xpose.msra.mxu0 0.0
        %853 = vmatprep.subr.mxu0 0.0
        %854 = vmatpush1.xpose.msra.mxu0 0.0
        %855 = vmatprep.mubr.f32.mxu0 0.0
        %v856 = vand.u32 %v220, 4294901760
        %857 = vmatmul.mubr.f32.gmra.mrb[0].mxu0 %v856
        %v858 = vpop.f32.mrb[0].mxu0
        %v859 = vadd.f32 %v772, %v858
        %v860 = vpop.f32.mrb[0].mxu0
        %861 = vdwg.mxu0
        %s862 = sld [smem:[#allocation2]]
        %v863 = vstv %s862
        %v864 = vadd.f32 %v859, %v863
        %v865 = vxor.u32 %v864, 2147483648
        %v866 = vmul.f32 %v865, 1.442695
        %v867 = vpow.pop %v866
        %v868 = vadd.f32 %v867, 1.0
        %v869 = vrcp.pop %v868
        %v870 = vmul.f32 1.0, %v869
        %871 = vst [vmem:[%s202] sm:$0xf] %v870
        %s872 = sand.u32 %s98, 1
        %s873 = scalar_lea.sflag [#allocation5], %s872
        %s874 = sand.u32 %s98, 1
        %s875 = smul.addr %s874, 4
        %s876 = scalar_lea.vmem [#allocation8], %s875
        // Predicated region
        $region41: #{tpu_custom_call.1} parent=31 // pred_check
          %p877 = pneg %p108
        $region42: #{tpu_custom_call.1} parent=31 // pred_check_branch
          %879 = sbr.rel (%p877) target = $region44
        $region43: #{tpu_custom_call.1} parent=31 // pred_region
          %s881 = ssub.s32 64, 64
          %882 = vsyncadd %s873, %s881
          %s883 = smul.addr %s22, 64
          %s884 = scalar_lea.hbm %s3, %s883
          %s886 = sshll.u32 %s876, 4
          %s887 = int_to_ptr.vmem [resolvable:$true] %s886
          %889 = dma.vmem_to_hbm [thread:$0]  %s887, 64, %s884, %s873
        $region44: #{tpu_custom_call.1} parent=31 // pred_fallthru
          _
      $region32: #{tpu_custom_call.1} parent=5 // pred_fallthru
        _
      %p890 = scmp.le.s32.totalorder 2, %s17
      // Predicated region
      $region45: #{tpu_custom_call.1} parent=5 // pred_check
        %p891 = pneg %p890
      $region46: #{tpu_custom_call.1} parent=5 // pred_check_branch
        %893 = sbr.rel (%p891) target = $region48
      $region47: #{tpu_custom_call.1} parent=5 // pred_region
        %s894 = ssub.s32 %s17, 2
        // Predicated region
        $region49: #{tpu_custom_call.1} parent=47 // pred_check
          %p895 = pneg %p114
        $region50: #{tpu_custom_call.1} parent=47 // pred_check_branch
          %897 = sbr.rel (%p895) target = $region52
        $region51: #{tpu_custom_call.1} parent=47 // pred_region
          %s898 = sand.u32 %s99, 1
          %s899 = scalar_lea.sflag [#allocation5], %s898
          %s900 = sand.u32 %s99, 1
          %s901 = smul.addr %s900, 4
          %s902 = scalar_lea.vmem [#allocation8], %s901
          %903 = dma.done %s899, 64
        $region52: #{tpu_custom_call.1} parent=47 // pred_fallthru
          _
      $region48: #{tpu_custom_call.1} parent=5 // pred_fallthru
        _
    $region6: #{tpu_custom_call.1} parent=1 // loop_footer
      %s21 = sadd.s32 1, %s17
    $region7: #{tpu_custom_call.1} parent=1 // loop_footer_branch
      %16 = sbr.rel target = $region3
    $region8: #{tpu_custom_call.1} parent=1 // loop_exit
      _
    %904 = vsyncpa [#allocation4], 1
    %s905 = scalar_lea.sflag [#allocation4], 1
    %906 = vsyncpa %s905, 1
    %907 = vsyncpa [#allocation7], 1
    %908 = vsyncpa [#allocation5], 1
    %s909 = scalar_lea.sflag [#allocation5], 1
    %910 = vsyncpa %s909, 1

</llo_original>
